<compile_context>
chip_gen: v6e
topology: v6e:2x2x1
jax: 0.10.0
libtpu: 0.0.40
codegen_flags: <defaults>
</compile_context>

<pallas_src>
import math

import jax
import jax.numpy as jnp
from jax.experimental import pallas as pl
from jax.experimental.pallas import tpu as pltpu

_LANE = 128
_SUB = 8
_RESIDENT_MAX_ROWS = 2048        # <= 1 MiB f32 slab -> whole-array resident block
_TARGET_CHUNKS_PER_CORE = 3      # keep the BlockSpec double-buffer busy
_MIN_BLOCK_ROWS = 256            # amortize ~0.35 us per-grid-step overhead
_TILED_VMEM_BUDGET = 40 << 20    # double-buffered inputs + accumulators cap


def _cdiv(a, b):
    return -(-a // b)


def _round_up(a, b):
    return _cdiv(a, b) * b


def _max_block_rows():
    # v7x streams ~2x faster than v6e -> larger blocks to amortize step overhead.
    try:
        kind = jax.devices()[0].device_kind.lower()
    except Exception:
        kind = ""
    return 4096 if "7" in kind else 2048


# ------------------------------- kernel ------------------------------------ #

def _make_fused_kernel(tiled_kinds, resident_kinds, br, rows, c_inner,
                       may_be_partial):
    """Fused reduction kernel.

    tiled_kinds    : per-term 'log' | 'sq' streamed over the chunk grid
    resident_kinds : per-term 'log' | 'sq' reduced once from whole-array blocks
    br, rows       : block rows / total valid rows of the tiled slabs
    c_inner        : chunks per outer ("parallel") index
    may_be_partial : whether any chunk can contain out-of-bounds rows
    """
    n_tiled_terms = len(tiled_kinds)
    n_res_terms = len(resident_kinds)
    n_tiled_in = sum(1 if k == 'log' else 2 for k in tiled_kinds)
    n_res_in = sum(1 if k == 'log' else 2 for k in resident_kinds)
    n_out = n_tiled_terms + n_res_terms

    def kernel(*refs):
        tiled_in = refs[:n_tiled_in]
        res_in = refs[n_tiled_in:n_tiled_in + n_res_in]
        outs = refs[n_tiled_in + n_res_in:n_tiled_in + n_res_in + n_out]
        accs = refs[n_tiled_in + n_res_in + n_out:]

        v = pl.program_id(0)          # megacore axis ("parallel")
        c = pl.program_id(1)          # streaming axis ("arbitrary")

        @pl.when(c == 0)
        def _init():
            for a in accs:
                a[...] = jnp.zeros_like(a)
            # Resident-term outputs default to zero so cores other than v==0
            # contribute nothing when the leading-axis partials are summed.
            for j in range(n_tiled_terms, n_out):
                outs[j][...] = jnp.zeros((1, 1, 1), jnp.float32)

        if n_res_terms:
            # Tiny whole-array terms: reduced exactly once (core 0, step 0).
            @pl.when((v == 0) & (c == 0))
            def _resident():
                i = 0
                for jj, kd in enumerate(resident_kinds):
                    j = n_tiled_terms + jj
                    if kd == 'log':
                        x = res_in[i][...].astype(jnp.float32)
                        i += 1
                        # TODO(synk): log(0) = -inf / negative -> NaN propagates,
                        # matching the PyTorch reference semantics.
                        outs[j][...] = jnp.sum(jnp.log(x)).reshape(1, 1, 1)
                    else:
                        d = (res_in[i][...].astype(jnp.float32)
                             - res_in[i + 1][...].astype(jnp.float32))
                        i += 2
                        outs[j][...] = jnp.sum(d * d).reshape(1, 1, 1)

        def _accumulate(row_mask):
            i = 0
            for j, kd in enumerate(tiled_kinds):
                if kd == 'log':
                    x = tiled_in[i][...].astype(jnp.float32)
                    i += 1
                    if row_mask is not None:
                        # Mask BEFORE log so OOB rows contribute log(1) = 0.
                        x = jnp.where(row_mask, x, 1.0)
                    accs[j][...] += jnp.log(x)           # EUP log + VPU add
                else:
                    d = (tiled_in[i][...].astype(jnp.float32)
                         - tiled_in[i + 1][...].astype(jnp.float32))
                    i += 2
                    if row_mask is not None:
                        d = jnp.where(row_mask, d, 0.0)
                    accs[j][...] += d * d                # pure VPU

        if may_be_partial:
            chunk = v * c_inner + c
            limit_rows = rows - chunk * br               # valid rows this chunk

            @pl.when(limit_rows >= br)                   # hot path: no mask work
            def _full():
                _accumulate(None)

            @pl.when(limit_rows < br)                    # at most once per core
            def _partial():
                row = jax.lax.broadcasted_iota(jnp.int32, (br, _LANE), 0)
                _accumulate(row < limit_rows)
        else:
            _accumulate(None)

        @pl.when(c == pl.num_programs(1) - 1)
        def _finish():
            # One cross-lane/sublane reduce per tiled term per core.
            for j in range(n_tiled_terms):
                outs[j][...] = jnp.sum(accs[j][...]).reshape(1, 1, 1)

    return kernel


# ------------------------------ launchers ---------------------------------- #

def _launch_entries(entries):
    """entries: list of (term_idx, kind, slabs, rows) with rows > 0.

    Returns {term_idx: scalar f32 bulk sum}.  The largest row-count group is
    streamed over the chunk grid; every smaller group that fits VMEM rides
    along as a whole-array resident block, so the common case is a single
    pallas_call for the whole loss.
    """
    result = {}
    rows = max(e[3] for e in entries)
    tiled, resident, leftover = [], [], []
    for e in entries:
        if e[3] == rows:
            tiled.append(e)
        elif e[3] <= _RESIDENT_MAX_ROWS:
            resident.append(e)
        else:
            leftover.append(e)
    if leftover:                                   # rare second large size class
        result.update(_launch_entries(leftover))

    n_tiled_in = sum(len(e[2]) for e in tiled)

    def tiled_vmem(b):                             # 2x-buffered inputs + accums
        return (2 * n_tiled_in + len(tiled)) * b * _LANE * 4

    # ---- block-rows / megacore layout -------------------------------------
    if rows <= _SUB:
        br, n_outer = rows, 1
    else:
        n_outer = 2
        ideal = _cdiv(rows, _TARGET_CHUNKS_PER_CORE * n_outer)
        br = min(_max_block_rows(), max(_MIN_BLOCK_ROWS, ideal))
        br = min(br, _cdiv(rows, n_outer))         # every core gets >= 1 chunk
        br = max(_SUB, _round_up(br, _SUB))
        while br > _MIN_BLOCK_ROWS and tiled_vmem(br) > _TILED_VMEM_BUDGET:
            br = max(_MIN_BLOCK_ROWS, _round_up(br // 2, _SUB))
    c_total = _cdiv(rows, br)
    if c_total < 2:
        n_outer = 1
    c_inner = _cdiv(c_total, n_outer)
    needs_clamp = n_outer * c_inner > c_total
    may_be_partial = (c_total * br != rows) or needs_clamp

    tiled_kinds = tuple(e[1] for e in tiled)
    resident_kinds = tuple(e[1] for e in resident)
    n_out = len(tiled) + len(resident)

    if needs_clamp:
        # Clamp so the extra grid slot re-reads an in-bounds block (its
        # contribution is zeroed by the limit mask) -> no unchecked OOB DMA.
        def tiled_map(v, c):
            return (jnp.minimum(v * c_inner + c, c_total - 1), 0)
    else:
        def tiled_map(v, c):
            return (v * c_inner + c, 0)
    res_map = lambda v, c: (0, 0)
    out_map = lambda v, c: (v, 0, 0)

    arrays, in_specs = [], []
    for e in tiled:
        for s in e[2]:
            arrays.append(s)
            in_specs.append(pl.BlockSpec((br, _LANE), tiled_map))
    resident_bytes = 0
    for e in resident:
        for s in e[2]:
            arrays.append(s)
            in_specs.append(pl.BlockSpec(s.shape, res_map))
            resident_bytes += int(s.size) * s.dtype.itemsize

    vmem_budget = tiled_vmem(br) + 2 * resident_bytes + (4 << 20)
    vmem_limit = int(min(64 << 20, max(32 << 20, vmem_budget)))

    kernel = _make_fused_kernel(tiled_kinds, resident_kinds, br, rows, c_inner,
                                may_be_partial)

    outs = pl.pallas_call(
        kernel,
        out_shape=tuple(jax.ShapeDtypeStruct((n_outer, 1, 1), jnp.float32)
                        for _ in range(n_out)),
        grid_spec=pltpu.PrefetchScalarGridSpec(
            num_scalar_prefetch=0,
            grid=(n_outer, c_inner),
            in_specs=in_specs,
            out_specs=tuple(pl.BlockSpec((1, 1, 1), out_map)
                            for _ in range(n_out)),
            scratch_shapes=[pltpu.VMEM((br, _LANE), jnp.float32)
                            for _ in tiled],
        ),
        compiler_params=pltpu.CompilerParams(
            dimension_semantics=("parallel", "arbitrary"),
            vmem_limit_bytes=vmem_limit),
    )(*arrays)
    if not isinstance(outs, (tuple, list)):
        outs = (outs,)

    for j, e in enumerate(tiled + resident):
        result[e[0]] = jnp.sum(outs[j])            # combine <=2 per-core partials
    return result


def _prepare_entry(idx, term):
    """Split a term into a lane-aligned bulk slab (native dtype, zero-copy
    reshape) and a <128-element tail summed in plain JAX (no jnp.pad pass)."""
    kind = term[0]
    flats = [jnp.reshape(a, (-1,)) for a in term[1:]]
    n = int(flats[0].shape[0])
    for f in flats:
        if int(f.shape[0]) != n:
            raise ValueError("sq-term operands must share an element count")
    rows = n // _LANE
    bulk = rows * _LANE
    tail_sum = None
    if bulk != n:
        tails = [f[bulk:].astype(jnp.float32) for f in flats]
        if kind == 'log':
            tail_sum = jnp.sum(jnp.log(tails[0]))
        else:
            d = tails[0] - tails[1]
            tail_sum = jnp.sum(d * d)
    slabs = []
    if rows:
        for f in flats:
            fb = f if bulk == n else f[:bulk]
            slabs.append(fb.reshape(rows, _LANE))
    return idx, kind, slabs, rows, tail_sum


def _reduce_terms(terms):
    """terms: list of ('log', x) or ('sq', a, b). Returns per-term scalar sums."""
    sums = [None] * len(terms)
    entries = []
    for idx, t in enumerate(terms):
        _, kind, slabs, rows, tail_sum = _prepare_entry(idx, t)
        sums[idx] = tail_sum if tail_sum is not None else jnp.float32(0.0)
        if rows:
            entries.append((idx, kind, slabs, rows))
    if entries:
        kernel_sums = _launch_entries(entries)
        for idx, s in kernel_sums.items():
            sums[idx] = sums[idx] + s
    return sums


# ----------------------------- loss module ---------------------------------- #

def mse_loss_stereo(output, target, lmbda):
    """JAX/Pallas equivalent of MSE_Loss_Stereo.forward.

    output: {'x_hat': (xhat0, xhat1),
             'likelihoods': ({name: arr, ...}, {name: arr, ...})}
    target: (target0, target1), each NCHW
    lmbda:  scalar or list of two scalars
    """
    target1, target2 = target[0], target[1]
    N, _, H, W = target1.shape
    num_pixels = N * H * W
    inv = 1.0 / (-math.log(2.0) * num_pixels)

    lik0 = list(output['likelihoods'][0].values())
    lik1 = list(output['likelihoods'][1].values())
    terms = ([('log', lk) for lk in lik0]
             + [('log', lk) for lk in lik1]
             + [('sq', output['x_hat'][0], target1),
                ('sq', output['x_hat'][1], target2)])
    sums = _reduce_terms(terms)

    n0, n1 = len(lik0), len(lik1)
    out = {}
    out['bpp0'] = sum(sums[:n0]) * inv
    out['bpp1'] = sum(sums[n0:n0 + n1]) * inv
    out['bpp_loss'] = (out['bpp0'] + out['bpp1']) / 2.0
    out['mse0'] = sums[n0 + n1] / target1.size
    out['mse1'] = sums[n0 + n1 + 1] / target2.size
    if isinstance(lmbda, list):
        out['mse_loss'] = (lmbda[0] * out['mse0'] + lmbda[1] * out['mse1']) / 2.0
    else:
        out['mse_loss'] = lmbda * (out['mse0'] + out['mse1']) / 2.0
    out['loss'] = out['mse_loss'] + out['bpp_loss']
    return out


# ------------------------------ reference ----------------------------------- #

def _reference(output, target, lmbda):
    target1, target2 = target[0], target[1]
    N, _, H, W = target1.shape
    num_pixels = N * H * W
    out = {}
    out['bpp0'] = sum(jnp.sum(jnp.log(lk)) / (-math.log(2.0) * num_pixels)
                      for lk in output['likelihoods'][0].values())
    out['bpp1'] = sum(jnp.sum(jnp.log(lk)) / (-math.log(2.0) * num_pixels)
                      for lk in output['likelihoods'][1].values())
    out['bpp_loss'] = (out['bpp0'] + out['bpp1']) / 2.0
    out['mse0'] = jnp.mean((output['x_hat'][0] - target1) ** 2)
    out['mse1'] = jnp.mean((output['x_hat'][1] - target2) ** 2)
    if isinstance(lmbda, list):
        out['mse_loss'] = (lmbda[0] * out['mse0'] + lmbda[1] * out['mse1']) / 2.0
    else:
        out['mse_loss'] = lmbda * (out['mse0'] + out['mse1']) / 2.0
    out['loss'] = out['mse_loss'] + out['bpp_loss']
    return out


if __name__ == "__main__":
    key = jax.random.PRNGKey(0)
    ks = jax.random.split(key, 8)

    # Small stereo pair of NCHW images.
    N, C, H, W = 2, 3, 16, 16
    target0 = jax.random.uniform(ks[0], (N, C, H, W), jnp.float32)
    target1 = jax.random.uniform(ks[1], (N, C, H, W), jnp.float32)
    xhat0 = jax.random.uniform(ks[2], (N, C, H, W), jnp.float32)
    xhat1 = jax.random.uniform(ks[3], (N, C, H, W), jnp.float32)

    # Likelihood tensors (entropy-model outputs), values in (0, 1].
    lik0 = {
        'y': jax.random.uniform(ks[4], (N, 8, 4, 4), jnp.float32, 0.01, 1.0),
        'z': jax.random.uniform(ks[5], (N, 4, 2, 2), jnp.float32, 0.01, 1.0),
    }
    lik1 = {
        'y': jax.random.uniform(ks[6], (N, 8, 4, 4), jnp.float32, 0.01, 1.0),
        'z': jax.random.uniform(ks[7], (N, 4, 2, 2), jnp.float32, 0.01, 1.0),
    }

    output = {'x_hat': (xhat0, xhat1), 'likelihoods': (lik0, lik1)}
    target = (target0, target1)
    lmbda = 0.0483

    out = mse_loss_stereo(output, target, lmbda)
    out = jax.tree_util.tree_map(jax.block_until_ready, out)
    ref = _reference(output, target, lmbda)
    for kname in ('bpp0', 'bpp1', 'bpp_loss', 'mse0', 'mse1', 'mse_loss', 'loss'):
        assert jnp.allclose(out[kname], ref[kname], rtol=1e-5, atol=1e-5), (
            kname, out[kname], ref[kname])

    # Exercise the list-lambda branch.
    out_list = mse_loss_stereo(output, target, [0.01, 0.02])
    jax.block_until_ready(out_list['loss'])

    # Larger config: odd chunk count (clamped megacore split), partial last
    # chunk, non-lane-aligned likelihoods (tail path) and resident blocks.
    ks2 = jax.random.split(jax.random.PRNGKey(1), 8)
    Nb, Cb, Hb, Wb = 2, 3, 160, 160
    tgt0 = jax.random.uniform(ks2[0], (Nb, Cb, Hb, Wb), jnp.float32)
    tgt1 = jax.random.uniform(ks2[1], (Nb, Cb, Hb, Wb), jnp.float32)
    xh0 = jax.random.uniform(ks2[2], (Nb, Cb, Hb, Wb), jnp.float32)
    xh1 = jax.random.uniform(ks2[3], (Nb, Cb, Hb, Wb), jnp.float32)
    l0 = {'y': jax.random.uniform(ks2[4], (Nb, 32, 10, 10), jnp.float32, 0.01, 1.0),
          'z': jax.random.uniform(ks2[5], (Nb, 13, 5, 7), jnp.float32, 0.01, 1.0)}
    l1 = {'y': jax.random.uniform(ks2[6], (Nb, 32, 10, 10), jnp.float32, 0.01, 1.0),
          'z': jax.random.uniform(ks2[7], (Nb, 13, 5, 7), jnp.float32, 0.01, 1.0)}
    output_b = {'x_hat': (xh0, xh1), 'likelihoods': (l0, l1)}
    target_b = (tgt0, tgt1)

    out_b = mse_loss_stereo(output_b, target_b, lmbda)
    out_b = jax.tree_util.tree_map(jax.block_until_ready, out_b)
    ref_b = _reference(output_b, target_b, lmbda)
    for kname in ('bpp_loss', 'mse0', 'mse1', 'loss'):
        assert jnp.allclose(out_b[kname], ref_b[kname], rtol=1e-5, atol=1e-5), (
            kname, out_b[kname], ref_b[kname])

    print("KERNEL_OK")
</pallas_src>

<mosaic_0001>
module attributes {stable_mosaic.version = 11 : i64} {
  func.func @kernel(%arg0: i32, %arg1: i32, %arg2: memref<8x128xf32, #tpu.memory_space<vmem>>, %arg3: memref<8x128xf32, #tpu.memory_space<vmem>>, %arg4: memref<8x128xf32, #tpu.memory_space<vmem>>, %arg5: memref<8x128xf32, #tpu.memory_space<vmem>>, %arg6: memref<2x128xf32, #tpu.memory_space<vmem>>, %arg7: memref<2x128xf32, #tpu.memory_space<vmem>>, %arg8: memref<1x1x1xf32, #tpu.memory_space<vmem>>, %arg9: memref<1x1x1xf32, #tpu.memory_space<vmem>>, %arg10: memref<1x1x1xf32, #tpu.memory_space<vmem>>, %arg11: memref<1x1x1xf32, #tpu.memory_space<vmem>>, %arg12: memref<8x128xf32, #tpu.memory_space<vmem>>, %arg13: memref<8x128xf32, #tpu.memory_space<vmem>>) attributes {dimension_semantics = [#tpu.dimension_semantics<parallel>, #tpu.dimension_semantics<arbitrary>], iteration_bounds = array<i64: 2, 1>, scalar_prefetch = 0 : i64, scratch_operands = 2 : i64, tpu.core_type = #tpu.core_type<tc>, window_params = [{transform_indices = @transform_0, window_bounds = array<i64: 8, 128>}, {transform_indices = @transform_1, window_bounds = array<i64: 8, 128>}, {transform_indices = @transform_2, window_bounds = array<i64: 8, 128>}, {transform_indices = @transform_3, window_bounds = array<i64: 8, 128>}, {pipeline_mode = #tpu.pipeline_mode<synchronous>, transform_indices = @transform_4, window_bounds = array<i64: 2, 128>}, {pipeline_mode = #tpu.pipeline_mode<synchronous>, transform_indices = @transform_5, window_bounds = array<i64: 2, 128>}, {transform_indices = @transform_6, window_bounds = array<i64: 1, 1, 1>}, {transform_indices = @transform_7, window_bounds = array<i64: 1, 1, 1>}, {transform_indices = @transform_8, window_bounds = array<i64: 1, 1, 1>}, {transform_indices = @transform_9, window_bounds = array<i64: 1, 1, 1>}]} {
    %c0_i32 = arith.constant 0 : i32
    %0 = arith.cmpi eq, %arg1, %c0_i32 : i32
    %1 = arith.extui %0 : i1 to i32
    %c0_i32_0 = arith.constant 0 : i32
    %2 = arith.cmpi ne, %1, %c0_i32_0 : i32
    scf.if %2 {
      %cst = arith.constant 0.000000e+00 : f32
      %21 = vector.broadcast %cst : f32 to vector<8x128xf32>
      %c0 = arith.constant 0 : index
      %c0_10 = arith.constant 0 : index
      %22 = vector.load %arg12[%c0, %c0_10] : memref<8x128xf32, #tpu.memory_space<vmem>>, vector<8x128xf32>
      tpu.vector_store %arg12[%c0, %c0_10], %21 {strides = array<i32>} : memref<8x128xf32, #tpu.memory_space<vmem>>, vector<8x128xf32>,
      %cst_11 = arith.constant 0.000000e+00 : f32
      %23 = vector.broadcast %cst_11 : f32 to vector<8x128xf32>
      %c0_12 = arith.constant 0 : index
      %c0_13 = arith.constant 0 : index
      %24 = vector.load %arg13[%c0_12, %c0_13] : memref<8x128xf32, #tpu.memory_space<vmem>>, vector<8x128xf32>
      tpu.vector_store %arg13[%c0_12, %c0_13], %23 {strides = array<i32>} : memref<8x128xf32, #tpu.memory_space<vmem>>, vector<8x128xf32>,
      %cst_14 = arith.constant 0.000000e+00 : f32
      %25 = vector.broadcast %cst_14 : f32 to vector<1x1x1xf32>
      %c0_15 = arith.constant 0 : index
      %c0_16 = arith.constant 0 : index
      %c0_17 = arith.constant 0 : index
      %26 = vector.load %arg10[%c0_15, %c0_16, %c0_17] : memref<1x1x1xf32, #tpu.memory_space<vmem>>, vector<1x1x1xf32>
      tpu.vector_store %arg10[%c0_15, %c0_16, %c0_17], %25 {strides = array<i32>} : memref<1x1x1xf32, #tpu.memory_space<vmem>>, vector<1x1x1xf32>,
      %cst_18 = arith.constant 0.000000e+00 : f32
      %27 = vector.broadcast %cst_18 : f32 to vector<1x1x1xf32>
      %c0_19 = arith.constant 0 : index
      %c0_20 = arith.constant 0 : index
      %c0_21 = arith.constant 0 : index
      %28 = vector.load %arg11[%c0_19, %c0_20, %c0_21] : memref<1x1x1xf32, #tpu.memory_space<vmem>>, vector<1x1x1xf32>
      tpu.vector_store %arg11[%c0_19, %c0_20, %c0_21], %27 {strides = array<i32>} : memref<1x1x1xf32, #tpu.memory_space<vmem>>, vector<1x1x1xf32>,
    } else {
    }
    %c0_i32_1 = arith.constant 0 : i32
    %3 = arith.cmpi eq, %arg0, %c0_i32_1 : i32
    %c0_i32_2 = arith.constant 0 : i32
    %4 = arith.cmpi eq, %arg1, %c0_i32_2 : i32
    %5 = arith.andi %3, %4 : i1
    %6 = arith.extui %5 : i1 to i32
    %c0_i32_3 = arith.constant 0 : i32
    %7 = arith.cmpi ne, %6, %c0_i32_3 : i32
    scf.if %7 {
      %c0 = arith.constant 0 : index
      %c0_10 = arith.constant 0 : index
      %21 = vector.load %arg6[%c0, %c0_10] : memref<2x128xf32, #tpu.memory_space<vmem>>, vector<2x128xf32>
      %22 = math.log %21 : vector<2x128xf32>
      %23 = vector.shape_cast %22 : vector<2x128xf32> to vector<1x2x128xf32>
      %cst = arith.constant dense<0.000000e+00> : vector<1xf32>
      %24 = vector.multi_reduction <add>, %23, %cst [1, 2] : vector<1x2x128xf32> to vector<1xf32>
      %25 = vector.shape_cast %24 : vector<1xf32> to vector<1x1x1xf32>
      %26 = vector.extract %25[0, 0, 0] : f32 from vector<1x1x1xf32>
      %27 = vector.broadcast %26 : f32 to vector<1x1x1xf32>
      %c0_11 = arith.constant 0 : index
      %c0_12 = arith.constant 0 : index
      %c0_13 = arith.constant 0 : index
      %28 = vector.load %arg10[%c0_11, %c0_12, %c0_13] : memref<1x1x1xf32, #tpu.memory_space<vmem>>, vector<1x1x1xf32>
      tpu.vector_store %arg10[%c0_11, %c0_12, %c0_13], %27 {strides = array<i32>} : memref<1x1x1xf32, #tpu.memory_space<vmem>>, vector<1x1x1xf32>,
      %c0_14 = arith.constant 0 : index
      %c0_15 = arith.constant 0 : index
      %29 = vector.load %arg7[%c0_14, %c0_15] : memref<2x128xf32, #tpu.memory_space<vmem>>, vector<2x128xf32>
      %30 = math.log %29 : vector<2x128xf32>
      %31 = vector.shape_cast %30 : vector<2x128xf32> to vector<1x2x128xf32>
      %cst_16 = arith.constant dense<0.000000e+00> : vector<1xf32>
      %32 = vector.multi_reduction <add>, %31, %cst_16 [1, 2] : vector<1x2x128xf32> to vector<1xf32>
      %33 = vector.shape_cast %32 : vector<1xf32> to vector<1x1x1xf32>
      %34 = vector.extract %33[0, 0, 0] : f32 from vector<1x1x1xf32>
      %35 = vector.broadcast %34 : f32 to vector<1x1x1xf32>
      %c0_17 = arith.constant 0 : index
      %c0_18 = arith.constant 0 : index
      %c0_19 = arith.constant 0 : index
      %36 = vector.load %arg11[%c0_17, %c0_18, %c0_19] : memref<1x1x1xf32, #tpu.memory_space<vmem>>, vector<1x1x1xf32>
      tpu.vector_store %arg11[%c0_17, %c0_18, %c0_19], %35 {strides = array<i32>} : memref<1x1x1xf32, #tpu.memory_space<vmem>>, vector<1x1x1xf32>,
    } else {
    }
    %c1_i32 = arith.constant 1 : i32
    %8 = arith.muli %arg0, %c1_i32 : i32
    %9 = arith.addi %8, %arg1 : i32
    %c8_i32 = arith.constant 8 : i32
    %10 = arith.muli %9, %c8_i32 : i32
    %c12_i32 = arith.constant 12 : i32
    %11 = arith.subi %c12_i32, %10 : i32
    %c8_i32_4 = arith.constant 8 : i32
    %12 = arith.cmpi sge, %11, %c8_i32_4 : i32
    %13 = arith.extui %12 : i1 to i32
    %c0_i32_5 = arith.constant 0 : i32
    %14 = arith.cmpi ne, %13, %c0_i32_5 : i32
    scf.if %14 {
      %c0 = arith.constant 0 : index
      %c0_10 = arith.constant 0 : index
      %21 = vector.load %arg2[%c0, %c0_10] : memref<8x128xf32, #tpu.memory_space<vmem>>, vector<8x128xf32>
      %c0_11 = arith.constant 0 : index
      %c0_12 = arith.constant 0 : index
      %22 = vector.load %arg3[%c0_11, %c0_12] : memref<8x128xf32, #tpu.memory_space<vmem>>, vector<8x128xf32>
      %23 = arith.subf %21, %22 : vector<8x128xf32>
      %c0_13 = arith.constant 0 : index
      %c0_14 = arith.constant 0 : index
      %24 = vector.load %arg12[%c0_13, %c0_14] : memref<8x128xf32, #tpu.memory_space<vmem>>, vector<8x128xf32>
      %25 = arith.mulf %23, %23 : vector<8x128xf32>
      %26 = arith.addf %24, %25 : vector<8x128xf32>
      %c0_15 = arith.constant 0 : index
      %c0_16 = arith.constant 0 : index
      %27 = vector.load %arg12[%c0_15, %c0_16] : memref<8x128xf32, #tpu.memory_space<vmem>>, vector<8x128xf32>
      tpu.vector_store %arg12[%c0_15, %c0_16], %26 {strides = array<i32>} : memref<8x128xf32, #tpu.memory_space<vmem>>, vector<8x128xf32>,
      %c0_17 = arith.constant 0 : index
      %c0_18 = arith.constant 0 : index
      %28 = vector.load %arg4[%c0_17, %c0_18] : memref<8x128xf32, #tpu.memory_space<vmem>>, vector<8x128xf32>
      %c0_19 = arith.constant 0 : index
      %c0_20 = arith.constant 0 : index
      %29 = vector.load %arg5[%c0_19, %c0_20] : memref<8x128xf32, #tpu.memory_space<vmem>>, vector<8x128xf32>
      %30 = arith.subf %28, %29 : vector<8x128xf32>
      %c0_21 = arith.constant 0 : index
      %c0_22 = arith.constant 0 : index
      %31 = vector.load %arg13[%c0_21, %c0_22] : memref<8x128xf32, #tpu.memory_space<vmem>>, vector<8x128xf32>
      %32 = arith.mulf %30, %30 : vector<8x128xf32>
      %33 = arith.addf %31, %32 : vector<8x128xf32>
      %c0_23 = arith.constant 0 : index
      %c0_24 = arith.constant 0 : index
      %34 = vector.load %arg13[%c0_23, %c0_24] : memref<8x128xf32, #tpu.memory_space<vmem>>, vector<8x128xf32>
      tpu.vector_store %arg13[%c0_23, %c0_24], %33 {strides = array<i32>} : memref<8x128xf32, #tpu.memory_space<vmem>>, vector<8x128xf32>,
    } else {
    }
    %c8_i32_6 = arith.constant 8 : i32
    %15 = arith.cmpi slt, %11, %c8_i32_6 : i32
    %16 = arith.extui %15 : i1 to i32
    %c0_i32_7 = arith.constant 0 : i32
    %17 = arith.cmpi ne, %16, %c0_i32_7 : i32
    scf.if %17 {
      %21 = tpu.iota {dimensions = array<i32: 0>} : vector<8x128xi32>
      %22 = vector.broadcast %11 : i32 to vector<8x128xi32>
      %23 = arith.cmpi slt, %21, %22 : vector<8x128xi32>
      %c0 = arith.constant 0 : index
      %c0_10 = arith.constant 0 : index
      %24 = vector.load %arg2[%c0, %c0_10] : memref<8x128xf32, #tpu.memory_space<vmem>>, vector<8x128xf32>
      %c0_11 = arith.constant 0 : index
      %c0_12 = arith.constant 0 : index
      %25 = vector.load %arg3[%c0_11, %c0_12] : memref<8x128xf32, #tpu.memory_space<vmem>>, vector<8x128xf32>
      %26 = arith.subf %24, %25 : vector<8x128xf32>
      %cst = arith.constant 0.000000e+00 : f32
      %27 = vector.broadcast %cst : f32 to vector<8x128xf32>
      %28 = arith.select %23, %26, %27 : vector<8x128xi1>, vector<8x128xf32>
      %c0_13 = arith.constant 0 : index
      %c0_14 = arith.constant 0 : index
      %29 = vector.load %arg12[%c0_13, %c0_14] : memref<8x128xf32, #tpu.memory_space<vmem>>, vector<8x128xf32>
      %30 = arith.mulf %28, %28 : vector<8x128xf32>
      %31 = arith.addf %29, %30 : vector<8x128xf32>
      %c0_15 = arith.constant 0 : index
      %c0_16 = arith.constant 0 : index
      %32 = vector.load %arg12[%c0_15, %c0_16] : memref<8x128xf32, #tpu.memory_space<vmem>>, vector<8x128xf32>
      tpu.vector_store %arg12[%c0_15, %c0_16], %31 {strides = array<i32>} : memref<8x128xf32, #tpu.memory_space<vmem>>, vector<8x128xf32>,
      %c0_17 = arith.constant 0 : index
      %c0_18 = arith.constant 0 : index
      %33 = vector.load %arg4[%c0_17, %c0_18] : memref<8x128xf32, #tpu.memory_space<vmem>>, vector<8x128xf32>
      %c0_19 = arith.constant 0 : index
      %c0_20 = arith.constant 0 : index
      %34 = vector.load %arg5[%c0_19, %c0_20] : memref<8x128xf32, #tpu.memory_space<vmem>>, vector<8x128xf32>
      %35 = arith.subf %33, %34 : vector<8x128xf32>
      %cst_21 = arith.constant 0.000000e+00 : f32
      %36 = vector.broadcast %cst_21 : f32 to vector<8x128xf32>
      %37 = arith.select %23, %35, %36 : vector<8x128xi1>, vector<8x128xf32>
      %c0_22 = arith.constant 0 : index
      %c0_23 = arith.constant 0 : index
      %38 = vector.load %arg13[%c0_22, %c0_23] : memref<8x128xf32, #tpu.memory_space<vmem>>, vector<8x128xf32>
      %39 = arith.mulf %37, %37 : vector<8x128xf32>
      %40 = arith.addf %38, %39 : vector<8x128xf32>
      %c0_24 = arith.constant 0 : index
      %c0_25 = arith.constant 0 : index
      %41 = vector.load %arg13[%c0_24, %c0_25] : memref<8x128xf32, #tpu.memory_space<vmem>>, vector<8x128xf32>
      tpu.vector_store %arg13[%c0_24, %c0_25], %40 {strides = array<i32>} : memref<8x128xf32, #tpu.memory_space<vmem>>, vector<8x128xf32>,
    } else {
    }
    %c0_i32_8 = arith.constant 0 : i32
    %18 = arith.cmpi eq, %arg1, %c0_i32_8 : i32
    %19 = arith.extui %18 : i1 to i32
    %c0_i32_9 = arith.constant 0 : i32
    %20 = arith.cmpi ne, %19, %c0_i32_9 : i32
    scf.if %20 {
      %c0 = arith.constant 0 : index
      %c0_10 = arith.constant 0 : index
      %21 = vector.load %arg12[%c0, %c0_10] : memref<8x128xf32, #tpu.memory_space<vmem>>, vector<8x128xf32>
      %22 = vector.shape_cast %21 : vector<8x128xf32> to vector<1x8x128xf32>
      %cst = arith.constant dense<0.000000e+00> : vector<1xf32>
      %23 = vector.multi_reduction <add>, %22, %cst [1, 2] : vector<1x8x128xf32> to vector<1xf32>
      %24 = vector.shape_cast %23 : vector<1xf32> to vector<1x1x1xf32>
      %25 = vector.extract %24[0, 0, 0] : f32 from vector<1x1x1xf32>
      %26 = vector.broadcast %25 : f32 to vector<1x1x1xf32>
      %c0_11 = arith.constant 0 : index
      %c0_12 = arith.constant 0 : index
      %c0_13 = arith.constant 0 : index
      %27 = vector.load %arg8[%c0_11, %c0_12, %c0_13] : memref<1x1x1xf32, #tpu.memory_space<vmem>>, vector<1x1x1xf32>
      tpu.vector_store %arg8[%c0_11, %c0_12, %c0_13], %26 {strides = array<i32>} : memref<1x1x1xf32, #tpu.memory_space<vmem>>, vector<1x1x1xf32>,
      %c0_14 = arith.constant 0 : index
      %c0_15 = arith.constant 0 : index
      %28 = vector.load %arg13[%c0_14, %c0_15] : memref<8x128xf32, #tpu.memory_space<vmem>>, vector<8x128xf32>
      %29 = vector.shape_cast %28 : vector<8x128xf32> to vector<1x8x128xf32>
      %cst_16 = arith.constant dense<0.000000e+00> : vector<1xf32>
      %30 = vector.multi_reduction <add>, %29, %cst_16 [1, 2] : vector<1x8x128xf32> to vector<1xf32>
      %31 = vector.shape_cast %30 : vector<1xf32> to vector<1x1x1xf32>
      %32 = vector.extract %31[0, 0, 0] : f32 from vector<1x1x1xf32>
      %33 = vector.broadcast %32 : f32 to vector<1x1x1xf32>
      %c0_17 = arith.constant 0 : index
      %c0_18 = arith.constant 0 : index
      %c0_19 = arith.constant 0 : index
      %34 = vector.load %arg9[%c0_17, %c0_18, %c0_19] : memref<1x1x1xf32, #tpu.memory_space<vmem>>, vector<1x1x1xf32>
      tpu.vector_store %arg9[%c0_17, %c0_18, %c0_19], %33 {strides = array<i32>} : memref<1x1x1xf32, #tpu.memory_space<vmem>>, vector<1x1x1xf32>,
    } else {
    }
    return
  }
  func.func @transform_0(%arg0: i32, %arg1: i32) -> (i32, i32) {
    %c1_i32 = arith.constant 1 : i32
    %0 = arith.muli %arg0, %c1_i32 : i32
    %1 = arith.addi %0, %arg1 : i32
    %c0_i32 = arith.constant 0 : i32
    %c0_i32_0 = arith.constant 0 : i32
    return %1, %c0_i32 : i32, i32
  }
  func.func @transform_1(%arg0: i32, %arg1: i32) -> (i32, i32) {
    %c1_i32 = arith.constant 1 : i32
    %0 = arith.muli %arg0, %c1_i32 : i32
    %1 = arith.addi %0, %arg1 : i32
    %c0_i32 = arith.constant 0 : i32
    %c0_i32_0 = arith.constant 0 : i32
    return %1, %c0_i32 : i32, i32
  }
  func.func @transform_2(%arg0: i32, %arg1: i32) -> (i32, i32) {
    %c1_i32 = arith.constant 1 : i32
    %0 = arith.muli %arg0, %c1_i32 : i32
    %1 = arith.addi %0, %arg1 : i32
    %c0_i32 = arith.constant 0 : i32
    %c0_i32_0 = arith.constant 0 : i32
    return %1, %c0_i32 : i32, i32
  }
  func.func @transform_3(%arg0: i32, %arg1: i32) -> (i32, i32) {
    %c1_i32 = arith.constant 1 : i32
    %0 = arith.muli %arg0, %c1_i32 : i32
    %1 = arith.addi %0, %arg1 : i32
    %c0_i32 = arith.constant 0 : i32
    %c0_i32_0 = arith.constant 0 : i32
    return %1, %c0_i32 : i32, i32
  }
  func.func @transform_4(%arg0: i32, %arg1: i32) -> (i32, i32) {
    %c0_i32 = arith.constant 0 : i32
    %c0_i32_0 = arith.constant 0 : i32
    %c0_i32_1 = arith.constant 0 : i32
    return %c0_i32, %c0_i32_0 : i32, i32
  }
  func.func @transform_5(%arg0: i32, %arg1: i32) -> (i32, i32) {
    %c0_i32 = arith.constant 0 : i32
    %c0_i32_0 = arith.constant 0 : i32
    %c0_i32_1 = arith.constant 0 : i32
    return %c0_i32, %c0_i32_0 : i32, i32
  }
  func.func @transform_6(%arg0: i32, %arg1: i32) -> (i32, i32, i32) {
    %c0_i32 = arith.constant 0 : i32
    %c0_i32_0 = arith.constant 0 : i32
    %c0_i32_1 = arith.constant 0 : i32
    return %arg0, %c0_i32, %c0_i32_0 : i32, i32, i32
  }
  func.func @transform_7(%arg0: i32, %arg1: i32) -> (i32, i32, i32) {
    %c0_i32 = arith.constant 0 : i32
    %c0_i32_0 = arith.constant 0 : i32
    %c0_i32_1 = arith.constant 0 : i32
    return %arg0, %c0_i32, %c0_i32_0 : i32, i32, i32
  }
  func.func @transform_8(%arg0: i32, %arg1: i32) -> (i32, i32, i32) {
    %c0_i32 = arith.constant 0 : i32
    %c0_i32_0 = arith.constant 0 : i32
    %c0_i32_1 = arith.constant 0 : i32
    return %arg0, %c0_i32, %c0_i32_0 : i32, i32, i32
  }
  func.func @transform_9(%arg0: i32, %arg1: i32) -> (i32, i32, i32) {
    %c0_i32 = arith.constant 0 : i32
    %c0_i32_0 = arith.constant 0 : i32
    %c0_i32_1 = arith.constant 0 : i32
    return %arg0, %c0_i32, %c0_i32_0 : i32, i32, i32
  }
}

</mosaic_0001>

<llo_original>
// kernel: tpu_custom_call.1
$region0: #{tpu_custom_call.1}
  #allocation0 [shape = 'u32[]', space=smem, size = 0x4, offset = 0x4, fixed_abs, tag = 'smem constant byte address 0x4 - core index']
  #allocation1 [shape = 'u32[144,128]{1,0:T(1,128)}', space=vmem, size = 0x12000, scoped, tag = 'internal scratch']
  #allocation2 [shape = 'f32[8,128]{1,0:T(8,128)}', space=vmem, size = 0x1000, scoped, tag = 'scratch operand']
  #allocation3 [shape = 'f32[8,128]{1,0:T(8,128)}', space=vmem, size = 0x1000, scoped, tag = 'scratch operand']
  %s0 = inlined_call_operand.hbm [shape: f32[12,128], index: 0, kind: input, shape index: {}]
  %s1 = inlined_call_operand.hbm [shape: f32[12,128], index: 1, kind: input, shape index: {}]
  %s2 = inlined_call_operand.hbm [shape: f32[12,128], index: 2, kind: input, shape index: {}]
  %s3 = inlined_call_operand.hbm [shape: f32[12,128], index: 3, kind: input, shape index: {}]
  %s4 = inlined_call_operand.vmem [shape: f32[2,128], index: 4, kind: input, shape index: {}]
  %s5 = inlined_call_operand.vmem [shape: f32[2,128], index: 5, kind: input, shape index: {}]
  %s6 = inlined_call_operand.vmem [shape: f32[2,1,1], index: 6, kind: output, shape index: {0}]
  %s7 = inlined_call_operand.vmem [shape: f32[2,1,1], index: 7, kind: output, shape index: {1}]
  %s8 = inlined_call_operand.vmem [shape: f32[2,1,1], index: 8, kind: output, shape index: {2}]
  %s9 = inlined_call_operand.vmem [shape: f32[2,1,1], index: 9, kind: output, shape index: {3}]
  %10 = xla_tuple %s6, %s7, %s8, %s9
  %s11 = sld [smem:[#allocation0]]
  $region117: #{tpu_custom_call.1} parent=0
    _
  %s13 = ssub.s32 1, %s11
  %s14 = scalar_select 0, %s13, %s11
  $region1: #{tpu_custom_call.1} parent=0
    #allocation4 [shape = 'u8[8192]{0}', space=vmem, size = 0x2000, scoped, tag = 'input window, operand 0']
    #allocation5 [shape = 's32[2]{0}', space=sflag, size = 0x8, scoped, tag = 'scoped memory for tpu_custom_call.1']
    #allocation6 [shape = 'u8[8192]{0}', space=vmem, size = 0x2000, scoped, tag = 'input window, operand 1']
    #allocation7 [shape = 's32[2]{0}', space=sflag, size = 0x8, scoped, tag = 'scoped memory for tpu_custom_call.1']
    #allocation8 [shape = 'u8[8192]{0}', space=vmem, size = 0x2000, scoped, tag = 'input window, operand 2']
    #allocation9 [shape = 'u8[8192]{0}', space=vmem, size = 0x2000, scoped, tag = 'input window, operand 3']
    #allocation10 [shape = 's32[2]{0}', space=sflag, size = 0x8, scoped, tag = 'scoped memory for tpu_custom_call.1']
    %15 = vsyncpa [#allocation5], 0
    %s16 = scalar_lea.sflag [#allocation5], 1
    %17 = vsyncpa %s16, 0
    %18 = vsyncpa [#allocation7], 0
    %s19 = scalar_lea.sflag [#allocation7], 1
    %20 = vsyncpa %s19, 0
    %21 = vsyncpa [#allocation10], 0
    %s22 = scalar_lea.sflag [#allocation10], 1
    %23 = vsyncpa %s22, 0
    loop: start=0, step=1, limit=4
    $region2: #{tpu_custom_call.1} parent=1 // loop_pre_header
      _
    $region3: #{tpu_custom_call.1} parent=1 // loop_header
      %s25 = sphi 0, %s29
      %p26 = scmp.ge.s32.totalorder %s25, 4
      %s32 = sphi 0, %s44
      %s33 = sphi 0, %s40
      %s34 = sphi 0, %s32
      %s35 = sphi 0, %s33
      %s36 = sphi 0, %s34
      %s37 = sphi 0, %s35
      %s49 = sphi 0, %s51
      %s52 = sphi 0, %s49
      %s53 = sphi 0, %s52
      %s69 = sphi 0, %s53
      %s77 = sphi 0, %s79
      %s80 = sphi 0, %s77
      %s81 = sphi 0, %s80
      %s97 = sphi 0, %s81
      %s105 = sphi 0, %s107
      %s108 = sphi 0, %s105
      %s109 = sphi 0, %s108
      %s125 = sphi 0, %s109
      %s133 = sphi 0, %s135
      %s136 = sphi 0, %s133
      %s137 = sphi 0, %s136
      %s153 = sphi 0, %s137
      %s157 = sphi 0, %s157
      %s159 = sphi 0, %s157
      %s160 = sphi 0, %s159
      %s174 = sphi 0, %s160
      %s178 = sphi 0, %s178
      %s180 = sphi 0, %s178
      %s181 = sphi 0, %s180
      %s195 = sphi 0, %s181
      %s201 = sphi 0, %s203
      %s204 = sphi 0, %s201
      %s205 = sphi 0, %s204
      %s221 = sphi 0, %s205
      %s227 = sphi 0, %s229
      %s230 = sphi 0, %s227
      %s231 = sphi 0, %s230
      %s247 = sphi 0, %s231
      %s253 = sphi 0, %s255
      %s256 = sphi 0, %s253
      %s257 = sphi 0, %s256
      %s273 = sphi 0, %s257
      %s279 = sphi 0, %s281
      %s282 = sphi 0, %s279
      %s283 = sphi 0, %s282
      %s299 = sphi 0, %s283
    $region4: #{tpu_custom_call.1} parent=1 // loop_header_branch
      %28 = sbr.rel (%p26) target = $region8
    $region5: #{tpu_custom_call.1} parent=1 // loop_body
      %s30 = ssub.s32 %s25, 1
      %s31 = ssub.s32 %s25, 2
      %s38 = sadd.s32 1, %s33
      %p39 = scmp.ge.s32.totalorder %s38, 1
      %s40 = scalar_select %p39, 0, %s38
      %s41 = sadd.s32 1, %s32
      %s42 = scalar_select %p39, %s41, %s32
      %p43 = scmp.ge.s32.totalorder %s42, 2
      %s44 = scalar_select %p43, 0, %s42
      %s45 = sadd.s32 %s32, %s33
      %s46 = sadd.s32 %s44, %s40
      %s47 = ssub.s32 %s45, %s46
      %p48 = scmp.eq.s32.totalorder %s47, 0
      %s50 = sadd.s32 %s49, 1
      %s51 = scalar_select %p48, %s49, %s50
      %p54 = pneg %p48
      %p55 = scmp.eq.s32.totalorder %s25, 1
      %p56 = por %p54, %p55
      %p57 = scmp.ne.s32.totalorder %s49, %s52
      %p58 = scmp.eq.s32.totalorder %s25, 0
      %p59 = por %p57, %p58
      %p60 = scmp.ne.s32.totalorder %s49, %s52
      %p61 = scmp.eq.s32.totalorder %s30, 1
      %p62 = por %p60, %p61
      %p63 = scmp.ne.s32.totalorder %s52, %s53
      %p64 = scmp.eq.s32.totalorder %s30, 0
      %p65 = por %p63, %p64
      %p66 = scmp.ne.s32.totalorder %s52, %s53
      %p67 = scmp.eq.s32.totalorder %s31, 1
      %p68 = por %p66, %p67
      %p70 = scmp.ne.s32.totalorder %s53, %s69
      %p71 = scmp.eq.s32.totalorder %s31, 0
      %p72 = por %p70, %p71
      %s73 = sadd.s32 %s32, %s33
      %s74 = sadd.s32 %s44, %s40
      %s75 = ssub.s32 %s73, %s74
      %p76 = scmp.eq.s32.totalorder %s75, 0
      %s78 = sadd.s32 %s77, 1
      %s79 = scalar_select %p76, %s77, %s78
      %p82 = pneg %p76
      %p83 = scmp.eq.s32.totalorder %s25, 1
      %p84 = por %p82, %p83
      %p85 = scmp.ne.s32.totalorder %s77, %s80
      %p86 = scmp.eq.s32.totalorder %s25, 0
      %p87 = por %p85, %p86
      %p88 = scmp.ne.s32.totalorder %s77, %s80
      %p89 = scmp.eq.s32.totalorder %s30, 1
      %p90 = por %p88, %p89
      %p91 = scmp.ne.s32.totalorder %s80, %s81
      %p92 = scmp.eq.s32.totalorder %s30, 0
      %p93 = por %p91, %p92
      %p94 = scmp.ne.s32.totalorder %s80, %s81
      %p95 = scmp.eq.s32.totalorder %s31, 1
      %p96 = por %p94, %p95
      %p98 = scmp.ne.s32.totalorder %s81, %s97
      %p99 = scmp.eq.s32.totalorder %s31, 0
      %p100 = por %p98, %p99
      %s101 = sadd.s32 %s32, %s33
      %s102 = sadd.s32 %s44, %s40
      %s103 = ssub.s32 %s101, %s102
      %p104 = scmp.eq.s32.totalorder %s103, 0
      %s106 = sadd.s32 %s105, 1
      %s107 = scalar_select %p104, %s105, %s106
      %p110 = pneg %p104
      %p111 = scmp.eq.s32.totalorder %s25, 1
      %p112 = por %p110, %p111
      %p113 = scmp.ne.s32.totalorder %s105, %s108
      %p114 = scmp.eq.s32.totalorder %s25, 0
      %p115 = por %p113, %p114
      %p116 = scmp.ne.s32.totalorder %s105, %s108
      %p117 = scmp.eq.s32.totalorder %s30, 1
      %p118 = por %p116, %p117
      %p119 = scmp.ne.s32.totalorder %s108, %s109
      %p120 = scmp.eq.s32.totalorder %s30, 0
      %p121 = por %p119, %p120
      %p122 = scmp.ne.s32.totalorder %s108, %s109
      %p123 = scmp.eq.s32.totalorder %s31, 1
      %p124 = por %p122, %p123
      %p126 = scmp.ne.s32.totalorder %s109, %s125
      %p127 = scmp.eq.s32.totalorder %s31, 0
      %p128 = por %p126, %p127
      %s129 = sadd.s32 %s32, %s33
      %s130 = sadd.s32 %s44, %s40
      %s131 = ssub.s32 %s129, %s130
      %p132 = scmp.eq.s32.totalorder %s131, 0
      %s134 = sadd.s32 %s133, 1
      %s135 = scalar_select %p132, %s133, %s134
      %p138 = pneg %p132
      %p139 = scmp.eq.s32.totalorder %s25, 1
      %p140 = por %p138, %p139
      %p141 = scmp.ne.s32.totalorder %s133, %s136
      %p142 = scmp.eq.s32.totalorder %s25, 0
      %p143 = por %p141, %p142
      %p144 = scmp.ne.s32.totalorder %s133, %s136
      %p145 = scmp.eq.s32.totalorder %s30, 1
      %p146 = por %p144, %p145
      %p147 = scmp.ne.s32.totalorder %s136, %s137
      %p148 = scmp.eq.s32.totalorder %s30, 0
      %p149 = por %p147, %p148
      %p150 = scmp.ne.s32.totalorder %s136, %s137
      %p151 = scmp.eq.s32.totalorder %s31, 1
      %p152 = por %p150, %p151
      %p154 = scmp.ne.s32.totalorder %s137, %s153
      %p155 = scmp.eq.s32.totalorder %s31, 0
      %p156 = por %p154, %p155
      %s158 = sadd.s32 %s157, 1
      %p161 = scmp.eq.s32.totalorder %s25, 1
      %p162 = scmp.ne.s32.totalorder %s157, %s159
      %p163 = scmp.eq.s32.totalorder %s25, 0
      %p164 = por %p162, %p163
      %p165 = scmp.ne.s32.totalorder %s157, %s159
      %p166 = scmp.eq.s32.totalorder %s30, 1
      %p167 = por %p165, %p166
      %p168 = scmp.ne.s32.totalorder %s159, %s160
      %p169 = scmp.eq.s32.totalorder %s30, 0
      %p170 = por %p168, %p169
      %p171 = scmp.ne.s32.totalorder %s159, %s160
      %p172 = scmp.eq.s32.totalorder %s31, 1
      %p173 = por %p171, %p172
      %p175 = scmp.ne.s32.totalorder %s160, %s174
      %p176 = scmp.eq.s32.totalorder %s31, 0
      %p177 = por %p175, %p176
      %s179 = sadd.s32 %s178, 1
      %p182 = scmp.eq.s32.totalorder %s25, 1
      %p183 = scmp.ne.s32.totalorder %s178, %s180
      %p184 = scmp.eq.s32.totalorder %s25, 0
      %p185 = por %p183, %p184
      %p186 = scmp.ne.s32.totalorder %s178, %s180
      %p187 = scmp.eq.s32.totalorder %s30, 1
      %p188 = por %p186, %p187
      %p189 = scmp.ne.s32.totalorder %s180, %s181
      %p190 = scmp.eq.s32.totalorder %s30, 0
      %p191 = por %p189, %p190
      %p192 = scmp.ne.s32.totalorder %s180, %s181
      %p193 = scmp.eq.s32.totalorder %s31, 1
      %p194 = por %p192, %p193
      %p196 = scmp.ne.s32.totalorder %s181, %s195
      %p197 = scmp.eq.s32.totalorder %s31, 0
      %p198 = por %p196, %p197
      %s199 = ssub.s32 %s32, %s44
      %p200 = scmp.eq.s32.totalorder %s199, 0
      %s202 = sadd.s32 %s201, 1
      %s203 = scalar_select %p200, %s201, %s202
      %p206 = pneg %p200
      %p207 = scmp.eq.s32.totalorder %s25, 1
      %p208 = por %p206, %p207
      %p209 = scmp.ne.s32.totalorder %s201, %s204
      %p210 = scmp.eq.s32.totalorder %s25, 0
      %p211 = por %p209, %p210
      %p212 = scmp.ne.s32.totalorder %s201, %s204
      %p213 = scmp.eq.s32.totalorder %s30, 1
      %p214 = por %p212, %p213
      %p215 = scmp.ne.s32.totalorder %s204, %s205
      %p216 = scmp.eq.s32.totalorder %s30, 0
      %p217 = por %p215, %p216
      %p218 = scmp.ne.s32.totalorder %s204, %s205
      %p219 = scmp.eq.s32.totalorder %s31, 1
      %p220 = por %p218, %p219
      %p222 = scmp.ne.s32.totalorder %s205, %s221
      %p223 = scmp.eq.s32.totalorder %s31, 0
      %p224 = por %p222, %p223
      %s225 = ssub.s32 %s32, %s44
      %p226 = scmp.eq.s32.totalorder %s225, 0
      %s228 = sadd.s32 %s227, 1
      %s229 = scalar_select %p226, %s227, %s228
      %p232 = pneg %p226
      %p233 = scmp.eq.s32.totalorder %s25, 1
      %p234 = por %p232, %p233
      %p235 = scmp.ne.s32.totalorder %s227, %s230
      %p236 = scmp.eq.s32.totalorder %s25, 0
      %p237 = por %p235, %p236
      %p238 = scmp.ne.s32.totalorder %s227, %s230
      %p239 = scmp.eq.s32.totalorder %s30, 1
      %p240 = por %p238, %p239
      %p241 = scmp.ne.s32.totalorder %s230, %s231
      %p242 = scmp.eq.s32.totalorder %s30, 0
      %p243 = por %p241, %p242
      %p244 = scmp.ne.s32.totalorder %s230, %s231
      %p245 = scmp.eq.s32.totalorder %s31, 1
      %p246 = por %p244, %p245
      %p248 = scmp.ne.s32.totalorder %s231, %s247
      %p249 = scmp.eq.s32.totalorder %s31, 0
      %p250 = por %p248, %p249
      %s251 = ssub.s32 %s32, %s44
      %p252 = scmp.eq.s32.totalorder %s251, 0
      %s254 = sadd.s32 %s253, 1
      %s255 = scalar_select %p252, %s253, %s254
      %p258 = pneg %p252
      %p259 = scmp.eq.s32.totalorder %s25, 1
      %p260 = por %p258, %p259
      %p261 = scmp.ne.s32.totalorder %s253, %s256
      %p262 = scmp.eq.s32.totalorder %s25, 0
      %p263 = por %p261, %p262
      %p264 = scmp.ne.s32.totalorder %s253, %s256
      %p265 = scmp.eq.s32.totalorder %s30, 1
      %p266 = por %p264, %p265
      %p267 = scmp.ne.s32.totalorder %s256, %s257
      %p268 = scmp.eq.s32.totalorder %s30, 0
      %p269 = por %p267, %p268
      %p270 = scmp.ne.s32.totalorder %s256, %s257
      %p271 = scmp.eq.s32.totalorder %s31, 1
      %p272 = por %p270, %p271
      %p274 = scmp.ne.s32.totalorder %s257, %s273
      %p275 = scmp.eq.s32.totalorder %s31, 0
      %p276 = por %p274, %p275
      %s277 = ssub.s32 %s32, %s44
      %p278 = scmp.eq.s32.totalorder %s277, 0
      %s280 = sadd.s32 %s279, 1
      %s281 = scalar_select %p278, %s279, %s280
      %p284 = pneg %p278
      %p285 = scmp.eq.s32.totalorder %s25, 1
      %p286 = por %p284, %p285
      %p287 = scmp.ne.s32.totalorder %s279, %s282
      %p288 = scmp.eq.s32.totalorder %s25, 0
      %p289 = por %p287, %p288
      %p290 = scmp.ne.s32.totalorder %s279, %s282
      %p291 = scmp.eq.s32.totalorder %s30, 1
      %p292 = por %p290, %p291
      %p293 = scmp.ne.s32.totalorder %s282, %s283
      %p294 = scmp.eq.s32.totalorder %s30, 0
      %p295 = por %p293, %p294
      %p296 = scmp.ne.s32.totalorder %s282, %s283
      %p297 = scmp.eq.s32.totalorder %s31, 1
      %p298 = por %p296, %p297
      %p300 = scmp.ne.s32.totalorder %s283, %s299
      %p301 = scmp.eq.s32.totalorder %s31, 0
      %p302 = por %p300, %p301
      %p303 = scmp.le.s32.totalorder 1, %s25
      %p304 = scmp.lt.s32.totalorder %s25, 3
      %p305 = pnand %p303, %p304
      %p306 = pneg %p305
      // Predicated region
      $region9: #{tpu_custom_call.1} parent=5 // pred_check
        _
      $region10: #{tpu_custom_call.1} parent=5 // pred_check_branch
        %308 = sbr.rel (%p305) target = $region12
      $region11: #{tpu_custom_call.1} parent=5 // pred_region
        %s309 = ssub.s32 %s25, 1
        // Predicated region
        $region13: #{tpu_custom_call.1} parent=11 // pred_check
          %p310 = pneg %p170
        $region14: #{tpu_custom_call.1} parent=11 // pred_check_branch
          %312 = sbr.rel (%p310) target = $region16
        $region15: #{tpu_custom_call.1} parent=11 // pred_region
          _
        $region16: #{tpu_custom_call.1} parent=11 // pred_fallthru
          _
        // Predicated region
        $region17: #{tpu_custom_call.1} parent=11 // pred_check
          %p313 = pneg %p191
        $region18: #{tpu_custom_call.1} parent=11 // pred_check_branch
          %315 = sbr.rel (%p313) target = $region20
        $region19: #{tpu_custom_call.1} parent=11 // pred_region
          _
        $region20: #{tpu_custom_call.1} parent=11 // pred_fallthru
          _
      $region12: #{tpu_custom_call.1} parent=5 // pred_fallthru
        _
      %p316 = scmp.lt.s32.totalorder %s25, 2
      // Predicated region
      $region21: #{tpu_custom_call.1} parent=5 // pred_check
        %p317 = pneg %p316
      $region22: #{tpu_custom_call.1} parent=5 // pred_check_branch
        %319 = sbr.rel (%p317) target = $region24
      $region23: #{tpu_custom_call.1} parent=5 // pred_region
        // Predicated region
        $region25: #{tpu_custom_call.1} parent=23 // pred_check
          %p320 = pneg %p59
        $region26: #{tpu_custom_call.1} parent=23 // pred_check_branch
          %322 = sbr.rel (%p320) target = $region28
        $region27: #{tpu_custom_call.1} parent=23 // pred_region
          %s323 = sand.u32 %s49, 1
          %s324 = scalar_lea.sflag [#allocation5], %s323
          %s325 = sand.u32 %s49, 1
          %s326 = smul.addr %s325, 8
          %s327 = scalar_lea.vmem [#allocation4], %s326
          %s328 = sadd.s32 %s32, %s33
          %s330 = ssub.s32 128, 128
          %331 = vsyncadd %s324, %s330
          %s332 = smul.addr %s328, 128
          %s333 = scalar_lea.hbm %s0, %s332
          %s335 = sshll.u32 %s327, 4
          %s336 = int_to_ptr.vmem [resolvable:$true] %s335
          %338 = dma.hbm_to_vmem [thread:$0]  %s333, 128, %s336, %s324
        $region28: #{tpu_custom_call.1} parent=23 // pred_fallthru
          _
        // Predicated region
        $region29: #{tpu_custom_call.1} parent=23 // pred_check
          %p339 = pneg %p87
        $region30: #{tpu_custom_call.1} parent=23 // pred_check_branch
          %341 = sbr.rel (%p339) target = $region32
        $region31: #{tpu_custom_call.1} parent=23 // pred_region
          %s342 = sand.u32 %s25, 1
          %s343 = scalar_lea.sflag [#allocation7], %s342
          %s344 = sand.u32 %s77, 1
          %s345 = smul.addr %s344, 8
          %s346 = scalar_lea.vmem [#allocation6], %s345
          %s347 = sadd.s32 %s32, %s33
          %s349 = ssub.s32 128, 128
          %350 = vsyncadd %s343, %s349
          %s351 = smul.addr %s347, 128
          %s352 = scalar_lea.hbm %s1, %s351
          %s354 = sshll.u32 %s346, 4
          %s355 = int_to_ptr.vmem [resolvable:$true] %s354
          %357 = dma.hbm_to_vmem [thread:$0]  %s352, 128, %s355, %s343
        $region32: #{tpu_custom_call.1} parent=23 // pred_fallthru
          _
        // Predicated region
        $region33: #{tpu_custom_call.1} parent=23 // pred_check
          %p358 = pneg %p115
        $region34: #{tpu_custom_call.1} parent=23 // pred_check_branch
          %360 = sbr.rel (%p358) target = $region36
        $region35: #{tpu_custom_call.1} parent=23 // pred_region
          %s361 = sand.u32 %s25, 1
          %s362 = scalar_lea.sflag [#allocation7], %s361
          %s363 = sand.u32 %s105, 1
          %s364 = smul.addr %s363, 8
          %s365 = scalar_lea.vmem [#allocation8], %s364
          %s366 = sadd.s32 %s32, %s33
          %s368 = ssub.s32 128, 128
          %369 = vsyncadd %s362, %s368
          %s370 = smul.addr %s366, 128
          %s371 = scalar_lea.hbm %s2, %s370
          %s373 = sshll.u32 %s365, 4
          %s374 = int_to_ptr.vmem [resolvable:$true] %s373
          %376 = dma.hbm_to_vmem [thread:$0]  %s371, 128, %s374, %s362
        $region36: #{tpu_custom_call.1} parent=23 // pred_fallthru
          _
        // Predicated region
        $region37: #{tpu_custom_call.1} parent=23 // pred_check
          %p377 = pneg %p143
        $region38: #{tpu_custom_call.1} parent=23 // pred_check_branch
          %379 = sbr.rel (%p377) target = $region40
        $region39: #{tpu_custom_call.1} parent=23 // pred_region
          %s380 = sand.u32 %s133, 1
          %s381 = scalar_lea.sflag [#allocation10], %s380
          %s382 = sand.u32 %s133, 1
          %s383 = smul.addr %s382, 8
          %s384 = scalar_lea.vmem [#allocation9], %s383
          %s385 = sadd.s32 %s32, %s33
          %s387 = ssub.s32 128, 128
          %388 = vsyncadd %s381, %s387
          %s389 = smul.addr %s385, 128
          %s390 = scalar_lea.hbm %s3, %s389
          %s392 = sshll.u32 %s384, 4
          %s393 = int_to_ptr.vmem [resolvable:$true] %s392
          %395 = dma.hbm_to_vmem [thread:$0]  %s390, 128, %s393, %s381
        $region40: #{tpu_custom_call.1} parent=23 // pred_fallthru
          _
      $region24: #{tpu_custom_call.1} parent=5 // pred_fallthru
        _
      %p396 = scmp.le.s32.totalorder 1, %s25
      %p397 = scmp.lt.s32.totalorder %s25, 3
      %p398 = pnand %p396, %p397
      %p399 = pneg %p398
      // Predicated region
      $region41: #{tpu_custom_call.1} parent=5 // pred_check
        _
      $region42: #{tpu_custom_call.1} parent=5 // pred_check_branch
        %401 = sbr.rel (%p398) target = $region44
      $region43: #{tpu_custom_call.1} parent=5 // pred_region
        %s402 = ssub.s32 %s25, 1
        %s403 = sand.u32 %s52, 1
        %s404 = scalar_lea.sflag [#allocation5], %s403
        %s405 = sand.u32 %s52, 1
        %s406 = smul.addr %s405, 8
        %s407 = scalar_lea.vmem [#allocation4], %s406
        // Predicated region
        $region45: #{tpu_custom_call.1} parent=43 // pred_check
          %p408 = pneg %p65
        $region46: #{tpu_custom_call.1} parent=43 // pred_check_branch
          %410 = sbr.rel (%p408) target = $region48
        $region47: #{tpu_custom_call.1} parent=43 // pred_region
          %411 = dma.done %s404, 128
        $region48: #{tpu_custom_call.1} parent=43 // pred_fallthru
          _
        %s412 = sand.u32 %s30, 1
        %s413 = scalar_lea.sflag [#allocation7], %s412
        %s414 = sand.u32 %s80, 1
        %s415 = smul.addr %s414, 8
        %s416 = scalar_lea.vmem [#allocation6], %s415
        // Predicated region
        $region49: #{tpu_custom_call.1} parent=43 // pred_check
          %p417 = pneg %p93
        $region50: #{tpu_custom_call.1} parent=43 // pred_check_branch
          %419 = sbr.rel (%p417) target = $region52
        $region51: #{tpu_custom_call.1} parent=43 // pred_region
          %420 = dma.done %s413, 128
        $region52: #{tpu_custom_call.1} parent=43 // pred_fallthru
          _
        %s421 = sand.u32 %s30, 1
        %s422 = scalar_lea.sflag [#allocation7], %s421
        %s423 = sand.u32 %s108, 1
        %s424 = smul.addr %s423, 8
        %s425 = scalar_lea.vmem [#allocation8], %s424
        // Predicated region
        $region53: #{tpu_custom_call.1} parent=43 // pred_check
          %p426 = pneg %p121
        $region54: #{tpu_custom_call.1} parent=43 // pred_check_branch
          %428 = sbr.rel (%p426) target = $region56
        $region55: #{tpu_custom_call.1} parent=43 // pred_region
          %429 = dma.done %s422, 128
        $region56: #{tpu_custom_call.1} parent=43 // pred_fallthru
          _
        %s430 = sand.u32 %s136, 1
        %s431 = scalar_lea.sflag [#allocation10], %s430
        %s432 = sand.u32 %s136, 1
        %s433 = smul.addr %s432, 8
        %s434 = scalar_lea.vmem [#allocation9], %s433
        // Predicated region
        $region57: #{tpu_custom_call.1} parent=43 // pred_check
          %p435 = pneg %p149
        $region58: #{tpu_custom_call.1} parent=43 // pred_check_branch
          %437 = sbr.rel (%p435) target = $region60
        $region59: #{tpu_custom_call.1} parent=43 // pred_region
          %438 = dma.done %s431, 128
        $region60: #{tpu_custom_call.1} parent=43 // pred_fallthru
          _
        %s439 = sand.u32 %s52, 1
        %s440 = scalar_lea.sflag [#allocation5], %s439
        %s441 = sand.u32 %s52, 1
        %s442 = smul.addr %s441, 8
        %s443 = scalar_lea.vmem [#allocation4], %s442
        %p444 = pneg %p65
        %p445 = pneg %p62
        %s446 = sand.u32 %s30, 1
        %s447 = scalar_lea.sflag [#allocation7], %s446
        %s448 = sand.u32 %s80, 1
        %s449 = smul.addr %s448, 8
        %s450 = scalar_lea.vmem [#allocation6], %s449
        %p451 = pneg %p93
        %p452 = pneg %p90
        %s453 = sand.u32 %s30, 1
        %s454 = scalar_lea.sflag [#allocation7], %s453
        %s455 = sand.u32 %s108, 1
        %s456 = smul.addr %s455, 8
        %s457 = scalar_lea.vmem [#allocation8], %s456
        %p458 = pneg %p121
        %p459 = pneg %p118
        %s460 = sand.u32 %s136, 1
        %s461 = scalar_lea.sflag [#allocation10], %s460
        %s462 = sand.u32 %s136, 1
        %s463 = smul.addr %s462, 8
        %s464 = scalar_lea.vmem [#allocation9], %s463
        %p465 = pneg %p149
        %p466 = pneg %p146
        %p467 = pneg %p170
        %p468 = pneg %p167
        %p469 = pneg %p191
        %p470 = pneg %p188
        %p471 = pneg %p217
        %p472 = pneg %p214
        %p473 = scmp.lt.s32.totalorder %s34, 1
        %s474 = scalar_select %p473, %s34, 1
        %s475 = scalar_lea.vmem %s6, %s474
        %p476 = pneg %p243
        %p477 = pneg %p240
        %p478 = scmp.lt.s32.totalorder %s34, 1
        %s479 = scalar_select %p478, %s34, 1
        %s480 = scalar_lea.vmem %s7, %s479
        %p481 = pneg %p269
        %p482 = pneg %p266
        %p483 = scmp.lt.s32.totalorder %s34, 1
        %s484 = scalar_select %p483, %s34, 1
        %s485 = scalar_lea.vmem %s8, %s484
        %p486 = pneg %p295
        %p487 = pneg %p292
        %p488 = scmp.lt.s32.totalorder %s34, 1
        %s489 = scalar_select %p488, %s34, 1
        %s490 = scalar_lea.vmem %s9, %s489
        %s491 = sadd.s32 %s34, %s35
        %s492 = sadd.s32 %s34, %s35
        %s493 = sadd.s32 %s34, %s35
        %s494 = sadd.s32 %s34, %s35
        %p495 = scmp.lt.s32.totalorder %s34, 1
        %s496 = scalar_select %p495, %s34, 1
        %s497 = scalar_lea.vmem %s6, %s496
        %p498 = scmp.lt.s32.totalorder %s34, 1
        %s499 = scalar_select %p498, %s34, 1
        %s500 = scalar_lea.vmem %s7, %s499
        %p501 = scmp.lt.s32.totalorder %s34, 1
        %s502 = scalar_select %p501, %s34, 1
        %s503 = scalar_lea.vmem %s8, %s502
        %p504 = scmp.lt.s32.totalorder %s34, 1
        %s505 = scalar_select %p504, %s34, 1
        %s506 = scalar_lea.vmem %s9, %s505
        %p507 = scmp.eq.s32.totalorder %s35, 0
        // Predicated region
        $region61: #{tpu_custom_call.1} parent=43 // pred_check
          %p508 = pneg %p507
        $region62: #{tpu_custom_call.1} parent=43 // pred_check_branch
          %510 = sbr.rel (%p508) target = $region64
        $region63: #{tpu_custom_call.1} parent=43 // pred_region
          %511 = vst [vmem:[#allocation2] sm:$0xff] 0.0
          %512 = vst [vmem:[#allocation3] sm:$0xff] 0.0
          %vm513 = vcmask 0
          %514 = vst.msk [vmem:[%s503] sm:$0x1] %vm513, 0.0
          %515 = vst.msk [vmem:[%s506] sm:$0x1] %vm513, 0.0
        $region64: #{tpu_custom_call.1} parent=43 // pred_fallthru
          _
        %p516 = scmp.eq.s32.totalorder %s34, 0
        %p517 = pnand %p516, %p507
        %p518 = pneg %p517
        // Predicated region
        $region65: #{tpu_custom_call.1} parent=43 // pred_check
          _
        $region66: #{tpu_custom_call.1} parent=43 // pred_check_branch
          %520 = sbr.rel (%p517) target = $region68
        $region67: #{tpu_custom_call.1} parent=43 // pred_region
          %v521 = vld [vmem:[%s4] sm:$0x3]
          %v522 = vlog2.pop %v521
          %v523 = vmul.f32 %v522, 0.6931472
          %vm524 = vcmask 1041408
          %v525 = vsel %vm524, %v523, 0.0
          %526 = vadd.xlane.f32.xlu0 %v525
          %v527 = vpop.xlane.xlu0 %526
          %v528 = vrot.slane %v527, 4
          %v529 = vadd.f32 %v527, %v528
          %v530 = vrot.slane %v529, 2
          %v531 = vadd.f32 %v529, %v530
          %v532 = vrot.slane %v531, 1
          %v533 = vadd.f32 %v531, %v532
          %s534 = vtos %v533
          %v535 = vstv %s534
          %vm536 = vcmask 0
          %537 = vst.msk [vmem:[%s503] sm:$0x1] %vm536, %v535
          %v538 = vld [vmem:[%s5] sm:$0x3]
          %v539 = vlog2.pop %v538
          %v540 = vmul.f32 %v539, 0.6931472
          %v541 = vsel %vm524, %v540, 0.0
          %542 = vadd.xlane.f32.xlu0 %v541
          %v543 = vpop.xlane.xlu0 %542
          %v544 = vrot.slane %v543, 4
          %v545 = vadd.f32 %v543, %v544
          %v546 = vrot.slane %v545, 2
          %v547 = vadd.f32 %v545, %v546
          %v548 = vrot.slane %v547, 1
          %v549 = vadd.f32 %v547, %v548
          %s550 = vtos %v549
          %v551 = vstv %s550
          %552 = vst.msk [vmem:[%s506] sm:$0x1] %vm536, %v551
        $region68: #{tpu_custom_call.1} parent=43 // pred_fallthru
          _
        %s553 = sadd.s32 %s34, %s35
        %s554 = smul.u32 %s553, 8
        %s555 = ssub.s32 12, %s554
        %p556 = scmp.ge.s32.totalorder %s555, 8
        // Predicated region
        $region69: #{tpu_custom_call.1} parent=43 // pred_check
          %p557 = pneg %p556
        $region70: #{tpu_custom_call.1} parent=43 // pred_check_branch
          %559 = sbr.rel (%p557) target = $region72
        $region71: #{tpu_custom_call.1} parent=43 // pred_region
          %v560 = vld [vmem:[%s407] sm:$0xff]
          %v561 = vld [vmem:[%s416] sm:$0xff]
          %v562 = vsub.f32 %v560, %v561
          %v563 = vld [vmem:[#allocation2] sm:$0xff]
          %v564 = vmul.f32 %v562, %v562
          %v565 = vadd.f32 %v563, %v564
          %566 = vst [vmem:[#allocation2] sm:$0xff] %v565
          %v567 = vld [vmem:[%s425] sm:$0xff]
          %v568 = vld [vmem:[%s434] sm:$0xff]
          %v569 = vsub.f32 %v567, %v568
          %v570 = vld [vmem:[#allocation3] sm:$0xff]
          %v571 = vmul.f32 %v569, %v569
          %v572 = vadd.f32 %v570, %v571
          %573 = vst [vmem:[#allocation3] sm:$0xff] %v572
        $region72: #{tpu_custom_call.1} parent=43 // pred_fallthru
          _
        %p574 = scmp.lt.s32.totalorder %s555, 8
        // Predicated region
        $region73: #{tpu_custom_call.1} parent=43 // pred_check
          %p575 = pneg %p574
        $region74: #{tpu_custom_call.1} parent=43 // pred_check_branch
          %577 = sbr.rel (%p575) target = $region76
        $region75: #{tpu_custom_call.1} parent=43 // pred_region
          %v578 = vlaneseq
          %v579 = vshrl.u32 %v578, 7
          %v580 = vstv %s555
          %vm581 = vcmp.lt.s32.totalorder %v579, %v580
          %v582 = vld [vmem:[%s407] sm:$0xff]
          %v583 = vld [vmem:[%s416] sm:$0xff]
          %v584 = vsub.f32 %v582, %v583
          %v585 = vsel %vm581, %v584, 0.0
          %v586 = vld [vmem:[#allocation2] sm:$0xff]
          %v587 = vmul.f32 %v585, %v585
          %v588 = vadd.f32 %v586, %v587
          %589 = vst [vmem:[#allocation2] sm:$0xff] %v588
          %v590 = vld [vmem:[%s425] sm:$0xff]
          %v591 = vld [vmem:[%s434] sm:$0xff]
          %v592 = vsub.f32 %v590, %v591
          %v593 = vsel %vm581, %v592, 0.0
          %v594 = vld [vmem:[#allocation3] sm:$0xff]
          %v595 = vmul.f32 %v593, %v593
          %v596 = vadd.f32 %v594, %v595
          %597 = vst [vmem:[#allocation3] sm:$0xff] %v596
        $region76: #{tpu_custom_call.1} parent=43 // pred_fallthru
          _
        // Predicated region
        $region77: #{tpu_custom_call.1} parent=43 // pred_check
          %p598 = pneg %p507
        $region78: #{tpu_custom_call.1} parent=43 // pred_check_branch
          %600 = sbr.rel (%p598) target = $region80
        $region79: #{tpu_custom_call.1} parent=43 // pred_region
          %v601 = vld [vmem:[#allocation2] sm:$0xff]
          %602 = vadd.xlane.f32.xlu0 %v601
          %v603 = vpop.xlane.xlu0 %602
          %v604 = vrot.slane %v603, 4
          %v605 = vadd.f32 %v603, %v604
          %v606 = vrot.slane %v605, 2
          %v607 = vadd.f32 %v605, %v606
          %v608 = vrot.slane %v607, 1
          %v609 = vadd.f32 %v607, %v608
          %s610 = vtos %v609
          %v611 = vstv %s610
          %vm612 = vcmask 0
          %613 = vst.msk [vmem:[%s497] sm:$0x1] %vm612, %v611
          %v614 = vld [vmem:[#allocation3] sm:$0xff]
          %615 = vadd.xlane.f32.xlu0 %v614
          %v616 = vpop.xlane.xlu0 %615
          %v617 = vrot.slane %v616, 4
          %v618 = vadd.f32 %v616, %v617
          %v619 = vrot.slane %v618, 2
          %v620 = vadd.f32 %v618, %v619
          %v621 = vrot.slane %v620, 1
          %v622 = vadd.f32 %v620, %v621
          %s623 = vtos %v622
          %v624 = vstv %s623
          %625 = vst.msk [vmem:[%s500] sm:$0x1] %vm612, %v624
        $region80: #{tpu_custom_call.1} parent=43 // pred_fallthru
          _
        %p626 = scmp.lt.s32.totalorder %s34, 1
        %s627 = scalar_select %p626, %s34, 1
        %s628 = scalar_lea.vmem %s6, %s627
        %p629 = scmp.lt.s32.totalorder %s34, 1
        %s630 = scalar_select %p629, %s34, 1
        %s631 = scalar_lea.vmem %s7, %s630
        %p632 = scmp.lt.s32.totalorder %s34, 1
        %s633 = scalar_select %p632, %s34, 1
        %s634 = scalar_lea.vmem %s8, %s633
        %p635 = scmp.lt.s32.totalorder %s34, 1
        %s636 = scalar_select %p635, %s34, 1
        %s637 = scalar_lea.vmem %s9, %s636
        // Predicated region
        $region81: #{tpu_custom_call.1} parent=43 // pred_check
          %p638 = pneg %p214
        $region82: #{tpu_custom_call.1} parent=43 // pred_check_branch
          %640 = sbr.rel (%p638) target = $region84
        $region83: #{tpu_custom_call.1} parent=43 // pred_region
          _
        $region84: #{tpu_custom_call.1} parent=43 // pred_fallthru
          _
        // Predicated region
        $region85: #{tpu_custom_call.1} parent=43 // pred_check
          %p641 = pneg %p240
        $region86: #{tpu_custom_call.1} parent=43 // pred_check_branch
          %643 = sbr.rel (%p641) target = $region88
        $region87: #{tpu_custom_call.1} parent=43 // pred_region
          _
        $region88: #{tpu_custom_call.1} parent=43 // pred_fallthru
          _
        // Predicated region
        $region89: #{tpu_custom_call.1} parent=43 // pred_check
          %p644 = pneg %p266
        $region90: #{tpu_custom_call.1} parent=43 // pred_check_branch
          %646 = sbr.rel (%p644) target = $region92
        $region91: #{tpu_custom_call.1} parent=43 // pred_region
          _
        $region92: #{tpu_custom_call.1} parent=43 // pred_fallthru
          _
        // Predicated region
        $region93: #{tpu_custom_call.1} parent=43 // pred_check
          %p647 = pneg %p292
        $region94: #{tpu_custom_call.1} parent=43 // pred_check_branch
          %649 = sbr.rel (%p647) target = $region96
        $region95: #{tpu_custom_call.1} parent=43 // pred_region
          _
        $region96: #{tpu_custom_call.1} parent=43 // pred_fallthru
          _
      $region44: #{tpu_custom_call.1} parent=5 // pred_fallthru
        _
      %p650 = scmp.le.s32.totalorder 2, %s25
      // Predicated region
      $region97: #{tpu_custom_call.1} parent=5 // pred_check
        %p651 = pneg %p650
      $region98: #{tpu_custom_call.1} parent=5 // pred_check_branch
        %653 = sbr.rel (%p651) target = $region100
      $region99: #{tpu_custom_call.1} parent=5 // pred_region
        %s654 = ssub.s32 %s25, 2
        // Predicated region
        $region101: #{tpu_custom_call.1} parent=99 // pred_check
          %p655 = pneg %p220
        $region102: #{tpu_custom_call.1} parent=99 // pred_check_branch
          %657 = sbr.rel (%p655) target = $region104
        $region103: #{tpu_custom_call.1} parent=99 // pred_region
          %p658 = scmp.lt.s32.totalorder %s36, 1
          %s659 = scalar_select %p658, %s36, 1
          %s660 = scalar_lea.vmem %s6, %s659
        $region104: #{tpu_custom_call.1} parent=99 // pred_fallthru
          _
        // Predicated region
        $region105: #{tpu_custom_call.1} parent=99 // pred_check
          %p661 = pneg %p246
        $region106: #{tpu_custom_call.1} parent=99 // pred_check_branch
          %663 = sbr.rel (%p661) target = $region108
        $region107: #{tpu_custom_call.1} parent=99 // pred_region
          %p664 = scmp.lt.s32.totalorder %s36, 1
          %s665 = scalar_select %p664, %s36, 1
          %s666 = scalar_lea.vmem %s7, %s665
        $region108: #{tpu_custom_call.1} parent=99 // pred_fallthru
          _
        // Predicated region
        $region109: #{tpu_custom_call.1} parent=99 // pred_check
          %p667 = pneg %p272
        $region110: #{tpu_custom_call.1} parent=99 // pred_check_branch
          %669 = sbr.rel (%p667) target = $region112
        $region111: #{tpu_custom_call.1} parent=99 // pred_region
          %p670 = scmp.lt.s32.totalorder %s36, 1
          %s671 = scalar_select %p670, %s36, 1
          %s672 = scalar_lea.vmem %s8, %s671
        $region112: #{tpu_custom_call.1} parent=99 // pred_fallthru
          _
        // Predicated region
        $region113: #{tpu_custom_call.1} parent=99 // pred_check
          %p673 = pneg %p298
        $region114: #{tpu_custom_call.1} parent=99 // pred_check_branch
          %675 = sbr.rel (%p673) target = $region116
        $region115: #{tpu_custom_call.1} parent=99 // pred_region
          %p676 = scmp.lt.s32.totalorder %s36, 1
          %s677 = scalar_select %p676, %s36, 1
          %s678 = scalar_lea.vmem %s9, %s677
        $region116: #{tpu_custom_call.1} parent=99 // pred_fallthru
          _
      $region100: #{tpu_custom_call.1} parent=5 // pred_fallthru
        _
    $region6: #{tpu_custom_call.1} parent=1 // loop_footer
      %s29 = sadd.s32 1, %s25
    $region7: #{tpu_custom_call.1} parent=1 // loop_footer_branch
      %24 = sbr.rel target = $region3
    $region8: #{tpu_custom_call.1} parent=1 // loop_exit
      _
    %679 = vsyncpa [#allocation5], 1
    %s680 = scalar_lea.sflag [#allocation5], 1
    %681 = vsyncpa %s680, 1
    %682 = vsyncpa [#allocation7], 1
    %s683 = scalar_lea.sflag [#allocation7], 1
    %684 = vsyncpa %s683, 1
    %685 = vsyncpa [#allocation10], 1
    %s686 = scalar_lea.sflag [#allocation10], 1
    %687 = vsyncpa %s686, 1

</llo_original>
